<compile_context>
chip_gen: v7x
topology: tpu7x:2x2x1
jax: 0.10.0
libtpu: 0.0.40
codegen_flags: <defaults>
</compile_context>

<pallas_src>
import jax
import jax.numpy as jnp
import numpy as np
from jax import lax
from jax.experimental import pallas as pl
from jax.experimental.pallas import tpu as pltpu


# ---------------------------------------------------------------------------
# Pallas kernel
# ---------------------------------------------------------------------------
def dep_mismatch_kernel(x_ref, len_ref, maxlen_ref, wih_f_ref, b_f_ref,
                        wih_b_ref, b_b_ref, whh_b_ref, wp_ref, bp_ref,
                        out_ref, xproj_ref):
    TB = x_ref.shape[0]                 # (T*Bp, E) bf16
    Bp = len_ref.shape[0]
    H = wp_ref.shape[-1]
    T = TB // Bp

    # --- prologue 1: backward-direction input projections for ALL timesteps in
    # one matmul (T*Bp, E) @ (E, 4H), bias folded in, stored to f32 VMEM scratch.
    # (Forward-direction projections for t > 0 were dead work and are gone.)
    xproj_ref[...] = (
        jnp.dot(x_ref[...], wih_b_ref[...], preferred_element_type=jnp.float32)
        + b_b_ref[...])

    def activate(gates):
        # ONE full-width sigmoid over the (Bp, 4H) lane-dense gates.  The g-gate
        # pre-activations were scaled by 2 at pack time, so tanh(z) is recovered
        # as 2*sigmoid(2z) - 1 with a cheap VPU affine fixup on that slice.
        s = jax.nn.sigmoid(gates)
        i = s[:, 0 * H:1 * H]
        f = s[:, 1 * H:2 * H]
        g = 2.0 * s[:, 2 * H:3 * H] - 1.0
        o = s[:, 3 * H:4 * H]
        return i, f, g, o

    # --- prologue 2: forward direction, output at t=0 only: single step from a
    # zero state.  Recurrent term vanishes (h0 = 0), so W_hh_f is never touched.
    gates_f0 = (jnp.dot(x_ref[0:Bp, :], wih_f_ref[...],
                        preferred_element_type=jnp.float32) + b_f_ref[...])
    i0, _, g0, o0 = activate(gates_f0)
    h_f0 = o0 * jnp.tanh(i0 * g0)       # c = f*0 + i*g

    # --- backward direction: masked reverse scan.  State stays zero until
    # t < length[b], so the first real update is at t = length[b]-1 from a zero
    # state -- exactly the packed-sequence backward pass.  Output at t=0 is the
    # final carry.  Fully-masked timesteps (t >= max(lengths)) are skipped.
    lengths = len_ref[...]              # (Bp, 1) int32
    zeros = jnp.zeros((Bp, H), jnp.float32)

    def body(step, carry):
        h, c = carry
        t = T - 1 - step
        row = pl.multiple_of(t * Bp, Bp)               # Bp is a multiple of 8
        gates = (xproj_ref[pl.ds(row, Bp), :]          # hoisted x-projection
                 + jnp.dot(h.astype(whh_b_ref.dtype), whh_b_ref[...],
                           preferred_element_type=jnp.float32))
        i, f, g, o = activate(gates)
        c_new = f * c + i * g
        h_new = o * jnp.tanh(c_new)
        valid = t < lengths                            # (Bp, 1) mask
        return jnp.where(valid, h_new, h), jnp.where(valid, c_new, c)

    start = T - maxlen_ref[0]                          # skip padded tail steps
    h_b0, _ = lax.fori_loop(start, T, body, (zeros, zeros))

    # --- sum directions -> Linear(H, 1) as VPU mul + lane reduce -> sigmoid.
    h_sum = h_f0 + h_b0                                # (Bp, H)
    logits = jnp.sum(h_sum * wp_ref[...], axis=-1, keepdims=True) + bp_ref[...]
    out_ref[...] = jax.nn.sigmoid(logits)              # (Bp, 1)


# ---------------------------------------------------------------------------
# Wrapper
# ---------------------------------------------------------------------------
def dep_mismatch_degree(x, lengths, params):
    T, B, E = x.shape
    H = params["wp"].shape[-1]
    Bp = ((B + 7) // 8) * 8            # pad batch to full 8-sublane tiles

    # Pad + cast in one shot (bf16), no f32 intermediate; (T, Bp, E) -> (T*Bp, E).
    x_p = jnp.zeros((T, Bp, E), jnp.bfloat16).at[:, :B, :].set(
        x.astype(jnp.bfloat16))
    x_flat = x_p.reshape(T * Bp, E)

    len_p = jnp.zeros((Bp, 1), jnp.int32).at[:B, 0].set(lengths.astype(jnp.int32))
    max_len = jnp.max(lengths).astype(jnp.int32).reshape((1,))   # SMEM scalar

    # Fold the tanh->sigmoid rewrite into the weights: scale g-gate (cols 2H:3H)
    # pre-activations by 2 so one full-width sigmoid covers all four gates.
    def scale_g(w):
        return w.at[..., 2 * H:3 * H].multiply(2.0)

    wih_f = scale_g(params["wih_f"]).astype(jnp.bfloat16)        # (E, 4H)
    b_f = scale_g(params["b_f"])                                 # (1, 4H) f32
    wih_b = scale_g(params["wih_b"]).astype(jnp.bfloat16)        # (E, 4H)
    b_b = scale_g(params["b_b"])                                 # (1, 4H) f32
    whh_b = scale_g(params["whh_b"]).astype(jnp.bfloat16)        # (H, 4H)
    # NOTE: params["whh_f"] is deliberately not passed -- with a zero initial
    # hidden state the forward t=0 output does not depend on it.

    ins = (x_flat, len_p, max_len, wih_f, b_f, wih_b, b_b, whh_b,
           params["wp"], params["bp"])
    vmem = lambda: pl.BlockSpec(memory_space=pltpu.MemorySpace.VMEM)
    smem = lambda: pl.BlockSpec(memory_space=pltpu.MemorySpace.SMEM)
    in_specs = [vmem(), vmem(), smem(), vmem(), vmem(), vmem(), vmem(),
                vmem(), vmem(), vmem()]

    out = pl.pallas_call(
        dep_mismatch_kernel,
        out_shape=jax.ShapeDtypeStruct((Bp, 1), jnp.float32),
        in_specs=in_specs,
        out_specs=vmem(),
        # Backward-only projections: half the previous scratch footprint.
        scratch_shapes=[pltpu.VMEM((T * Bp, 4 * H), jnp.float32)],
    )(*ins)
    return out[:B]


# ---------------------------------------------------------------------------
# Deterministic parameter init (PyTorch-style U(-1/sqrt(H), 1/sqrt(H))),
# already in the gate-packed (.., 4H) layout, gate order (i, f, g, o).
# ---------------------------------------------------------------------------
def init_params(key, E, H):
    k = 1.0 / float(np.sqrt(H))
    ks = jax.random.split(key, 10)
    u = lambda kk, shape: jax.random.uniform(kk, shape, jnp.float32, -k, k)
    return dict(
        wih_f=u(ks[0], (E, 4 * H)), whh_f=u(ks[1], (H, 4 * H)),
        b_f=u(ks[2], (1, 4 * H)) + u(ks[3], (1, 4 * H)),      # b_ih + b_hh
        wih_b=u(ks[4], (E, 4 * H)), whh_b=u(ks[5], (H, 4 * H)),
        b_b=u(ks[6], (1, 4 * H)) + u(ks[7], (1, 4 * H)),
        wp=u(ks[8], (1, H)), bp=u(ks[9], (1, 1)),
    )


# ---------------------------------------------------------------------------
# Pure-JAX f32 reference (same math, no Pallas, no bf16) for validation
# ---------------------------------------------------------------------------
def reference(x, lengths, params):
    T, B, E = x.shape
    H = params["wp"].shape[-1]

    def cell(x_t, h, c, wih, whh, b):
        gates = x_t @ wih + h @ whh + b
        i = jax.nn.sigmoid(gates[:, 0 * H:1 * H])
        f = jax.nn.sigmoid(gates[:, 1 * H:2 * H])
        g = jnp.tanh(gates[:, 2 * H:3 * H])
        o = jax.nn.sigmoid(gates[:, 3 * H:4 * H])
        c_new = f * c + i * g
        return o * jnp.tanh(c_new), c_new

    zeros = jnp.zeros((B, H), jnp.float32)
    h_f0, _ = cell(x[0], zeros, zeros, params["wih_f"], params["whh_f"], params["b_f"])

    h, c = zeros, zeros
    for step in range(T):
        t = T - 1 - step
        h_new, c_new = cell(x[t], h, c, params["wih_b"], params["whh_b"], params["b_b"])
        valid = (t < lengths)[:, None]
        h = jnp.where(valid, h_new, h)
        c = jnp.where(valid, c_new, c)

    logits = jnp.sum((h_f0 + h) * params["wp"], axis=-1, keepdims=True) + params["bp"]
    return jax.nn.sigmoid(logits)


if __name__ == "__main__":
    T, B, E, H = 8, 4, 32, 32          # seq=8, batch=4, embedding=32, hidden=32
    key = jax.random.PRNGKey(0)
    kx, kp = jax.random.split(key)

    x = jax.random.normal(kx, (T, B, E), jnp.float32)
    # lengths sorted descending, as pack_padded_sequence(enforce_sorted=True) requires
    lengths = jnp.array([8, 6, 5, 3], dtype=jnp.int32)

    params = init_params(kp, E, H)

    out = dep_mismatch_degree(x, lengths, params)
    out = jax.block_until_ready(out)

    ref = reference(x, lengths, params)
    assert out.shape == (B, 1)
    # Tolerance relaxed vs the f32 reference because matmul operands are bf16
    # (f32 accumulation).
    np.testing.assert_allclose(np.asarray(out), np.asarray(ref), rtol=2e-2, atol=2e-2)
    print("KERNEL_OK")
</pallas_src>

<mosaic_0001>
module attributes {stable_mosaic.version = 11 : i64} {
  func.func @dep_mismatch_kernel(%arg0: memref<64x32xbf16, #tpu.memory_space<vmem>>, %arg1: memref<8x1xi32, #tpu.memory_space<vmem>>, %arg2: memref<1xi32, #tpu.memory_space<smem>>, %arg3: memref<32x128xbf16, #tpu.memory_space<vmem>>, %arg4: memref<1x128xf32, #tpu.memory_space<vmem>>, %arg5: memref<32x128xbf16, #tpu.memory_space<vmem>>, %arg6: memref<1x128xf32, #tpu.memory_space<vmem>>, %arg7: memref<32x128xbf16, #tpu.memory_space<vmem>>, %arg8: memref<1x32xf32, #tpu.memory_space<vmem>>, %arg9: memref<1x1xf32, #tpu.memory_space<vmem>>, %arg10: memref<8x1xf32, #tpu.memory_space<vmem>>, %arg11: memref<64x128xf32, #tpu.memory_space<vmem>>) attributes {dimension_semantics = [], scalar_prefetch = 0 : i64, scratch_operands = 1 : i64, tpu.core_type = #tpu.core_type<tc>} {
    %c0 = arith.constant 0 : index
    %c0_0 = arith.constant 0 : index
    %0 = vector.load %arg0[%c0, %c0_0] : memref<64x32xbf16, #tpu.memory_space<vmem>>, vector<64x32xbf16>
    %c0_1 = arith.constant 0 : index
    %c0_2 = arith.constant 0 : index
    %1 = vector.load %arg5[%c0_1, %c0_2] : memref<32x128xbf16, #tpu.memory_space<vmem>>, vector<32x128xbf16>
    %cst = arith.constant dense<0.000000e+00> : vector<64x128xf32>
    %2 = tpu.matmul %0, %1, %cst {dimension_numbers = #tpu.dot_dimension_numbers<[1], [0], [0], [1], [0, 0, 1, 1], [], []>} : vector<64x32xbf16>, vector<32x128xbf16>, vector<64x128xf32> -> vector<64x128xf32>
    %c0_3 = arith.constant 0 : index
    %c0_4 = arith.constant 0 : index
    %3 = vector.load %arg6[%c0_3, %c0_4] : memref<1x128xf32, #tpu.memory_space<vmem>>, vector<1x128xf32>
    %4 = vector.broadcast %3 : vector<1x128xf32> to vector<64x128xf32>
    %5 = arith.addf %2, %4 : vector<64x128xf32>
    %c0_5 = arith.constant 0 : index
    %c0_6 = arith.constant 0 : index
    %6 = vector.load %arg11[%c0_5, %c0_6] : memref<64x128xf32, #tpu.memory_space<vmem>>, vector<64x128xf32>
    tpu.vector_store %arg11[%c0_5, %c0_6], %5 {strides = array<i32>} : memref<64x128xf32, #tpu.memory_space<vmem>>, vector<64x128xf32>,
    %c0_7 = arith.constant 0 : index
    %c0_8 = arith.constant 0 : index
    %7 = vector.load %arg0[%c0_7, %c0_8] : memref<64x32xbf16, #tpu.memory_space<vmem>>, vector<8x32xbf16>
    %c0_9 = arith.constant 0 : index
    %c0_10 = arith.constant 0 : index
    %8 = vector.load %arg3[%c0_9, %c0_10] : memref<32x128xbf16, #tpu.memory_space<vmem>>, vector<32x128xbf16>
    %cst_11 = arith.constant dense<0.000000e+00> : vector<8x128xf32>
    %9 = tpu.matmul %7, %8, %cst_11 {dimension_numbers = #tpu.dot_dimension_numbers<[1], [0], [0], [1], [0, 0, 1, 1], [], []>} : vector<8x32xbf16>, vector<32x128xbf16>, vector<8x128xf32> -> vector<8x128xf32>
    %c0_12 = arith.constant 0 : index
    %c0_13 = arith.constant 0 : index
    %10 = vector.load %arg4[%c0_12, %c0_13] : memref<1x128xf32, #tpu.memory_space<vmem>>, vector<1x128xf32>
    %11 = vector.broadcast %10 : vector<1x128xf32> to vector<8x128xf32>
    %12 = arith.addf %9, %11 : vector<8x128xf32>
    %13 = arith.negf %12 : vector<8x128xf32>
    %14 = math.exp %13 : vector<8x128xf32>
    %cst_14 = arith.constant 1.000000e+00 : f32
    %15 = vector.broadcast %cst_14 : f32 to vector<8x128xf32>
    %16 = arith.addf %15, %14 : vector<8x128xf32>
    %17 = arith.divf %15, %16 : vector<8x128xf32>
    %18 = vector.extract_strided_slice %17 {offsets = [0, 0], sizes = [8, 32], strides = [1, 1]} : vector<8x128xf32> to vector<8x32xf32>
    %19 = vector.extract_strided_slice %17 {offsets = [0, 64], sizes = [8, 32], strides = [1, 1]} : vector<8x128xf32> to vector<8x32xf32>
    %cst_15 = arith.constant 2.000000e+00 : f32
    %20 = vector.broadcast %cst_15 : f32 to vector<8x32xf32>
    %21 = arith.mulf %20, %19 : vector<8x32xf32>
    %cst_16 = arith.constant 1.000000e+00 : f32
    %22 = vector.broadcast %cst_16 : f32 to vector<8x32xf32>
    %23 = arith.subf %21, %22 : vector<8x32xf32>
    %24 = vector.extract_strided_slice %17 {offsets = [0, 96], sizes = [8, 32], strides = [1, 1]} : vector<8x128xf32> to vector<8x32xf32>
    %25 = arith.mulf %18, %23 : vector<8x32xf32>
    %26 = math.tanh %25 : vector<8x32xf32>
    %27 = arith.mulf %24, %26 : vector<8x32xf32>
    %c0_17 = arith.constant 0 : index
    %c0_18 = arith.constant 0 : index
    %28 = vector.load %arg1[%c0_17, %c0_18] : memref<8x1xi32, #tpu.memory_space<vmem>>, vector<8x1xi32>
    %cst_19 = arith.constant 0.000000e+00 : f32
    %29 = vector.broadcast %cst_19 : f32 to vector<8x32xf32>
    %c0_20 = arith.constant 0 : index
    %30 = memref.load %arg2[%c0_20] : memref<1xi32, #tpu.memory_space<smem>>
    %c8_i32 = arith.constant 8 : i32
    %31 = arith.subi %c8_i32, %30 : i32
    %c8_i32_21 = arith.constant 8 : i32
    %32 = arith.subi %c8_i32_21, %31 : i32
    %33 = arith.addi %31, %32 : i32
    %c1_i32 = arith.constant 1 : i32
    %34:2 = scf.for %arg12 = %31 to %33 step %c1_i32 iter_args(%arg13 = %29, %arg14 = %29) -> (vector<8x32xf32>, vector<8x32xf32>)  : i32 {
      %c7_i32 = arith.constant 7 : i32
      %50 = arith.subi %c7_i32, %arg12 : i32
      %c8_i32_30 = arith.constant 8 : i32
      %51 = arith.muli %50, %c8_i32_30 : i32
      %52 = tpu.assume_multiple %51, 8 : i32
      %53 = arith.index_cast %52 : i32 to index
      %c0_31 = arith.constant 0 : index
      %54 = vector.load %arg11[%53, %c0_31] : memref<64x128xf32, #tpu.memory_space<vmem>>, vector<8x128xf32>
      %55 = arith.truncf %arg13 : vector<8x32xf32> to vector<8x32xbf16>
      %c0_32 = arith.constant 0 : index
      %c0_33 = arith.constant 0 : index
      %56 = vector.load %arg7[%c0_32, %c0_33] : memref<32x128xbf16, #tpu.memory_space<vmem>>, vector<32x128xbf16>
      %cst_34 = arith.constant dense<0.000000e+00> : vector<8x128xf32>
      %57 = tpu.matmul %55, %56, %cst_34 {dimension_numbers = #tpu.dot_dimension_numbers<[1], [0], [0], [1], [0, 0, 1, 1], [], []>} : vector<8x32xbf16>, vector<32x128xbf16>, vector<8x128xf32> -> vector<8x128xf32>
      %58 = arith.addf %54, %57 : vector<8x128xf32>
      %59 = arith.negf %58 : vector<8x128xf32>
      %60 = math.exp %59 : vector<8x128xf32>
      %cst_35 = arith.constant 1.000000e+00 : f32
      %61 = vector.broadcast %cst_35 : f32 to vector<8x128xf32>
      %62 = arith.addf %61, %60 : vector<8x128xf32>
      %63 = arith.divf %61, %62 : vector<8x128xf32>
      %64 = vector.extract_strided_slice %63 {offsets = [0, 0], sizes = [8, 32], strides = [1, 1]} : vector<8x128xf32> to vector<8x32xf32>
      %65 = vector.extract_strided_slice %63 {offsets = [0, 32], sizes = [8, 32], strides = [1, 1]} : vector<8x128xf32> to vector<8x32xf32>
      %66 = vector.extract_strided_slice %63 {offsets = [0, 64], sizes = [8, 32], strides = [1, 1]} : vector<8x128xf32> to vector<8x32xf32>
      %cst_36 = arith.constant 2.000000e+00 : f32
      %67 = vector.broadcast %cst_36 : f32 to vector<8x32xf32>
      %68 = arith.mulf %67, %66 : vector<8x32xf32>
      %cst_37 = arith.constant 1.000000e+00 : f32
      %69 = vector.broadcast %cst_37 : f32 to vector<8x32xf32>
      %70 = arith.subf %68, %69 : vector<8x32xf32>
      %71 = vector.extract_strided_slice %63 {offsets = [0, 96], sizes = [8, 32], strides = [1, 1]} : vector<8x128xf32> to vector<8x32xf32>
      %72 = arith.mulf %65, %arg14 : vector<8x32xf32>
      %73 = arith.mulf %64, %70 : vector<8x32xf32>
      %74 = arith.addf %72, %73 : vector<8x32xf32>
      %75 = math.tanh %74 : vector<8x32xf32>
      %76 = arith.mulf %71, %75 : vector<8x32xf32>
      %77 = vector.broadcast %50 : i32 to vector<8x1xi32>
      %78 = arith.cmpi slt, %77, %28 : vector<8x1xi32>
      %79 = vector.shape_cast %78 : vector<8x1xi1> to vector<8x1xi1>
      %80 = vector.broadcast %79 : vector<8x1xi1> to vector<8x32xi1>
      %81 = arith.select %80, %76, %arg13 : vector<8x32xi1>, vector<8x32xf32>
      %82 = vector.shape_cast %78 : vector<8x1xi1> to vector<8x1xi1>
      %83 = vector.broadcast %82 : vector<8x1xi1> to vector<8x32xi1>
      %84 = arith.select %83, %74, %arg14 : vector<8x32xi1>, vector<8x32xf32>
      scf.yield %81, %84 : vector<8x32xf32>, vector<8x32xf32>
    }
    %35 = arith.addf %27, %34#0 : vector<8x32xf32>
    %c0_22 = arith.constant 0 : index
    %c0_23 = arith.constant 0 : index
    %36 = vector.load %arg8[%c0_22, %c0_23] : memref<1x32xf32, #tpu.memory_space<vmem>>, vector<1x32xf32>
    %37 = vector.broadcast %36 : vector<1x32xf32> to vector<8x32xf32>
    %38 = arith.mulf %35, %37 : vector<8x32xf32>
    %cst_24 = arith.constant dense<0.000000e+00> : vector<8xf32>
    %39 = vector.multi_reduction <add>, %38, %cst_24 [1] : vector<8x32xf32> to vector<8xf32>
    %40 = vector.shape_cast %39 : vector<8xf32> to vector<8x1xf32>
    %c0_25 = arith.constant 0 : index
    %c0_26 = arith.constant 0 : index
    %41 = vector.load %arg9[%c0_25, %c0_26] : memref<1x1xf32, #tpu.memory_space<vmem>>, vector<1x1xf32>
    %42 = vector.broadcast %41 : vector<1x1xf32> to vector<8x1xf32>
    %43 = arith.addf %40, %42 : vector<8x1xf32>
    %44 = arith.negf %43 : vector<8x1xf32>
    %45 = math.exp %44 : vector<8x1xf32>
    %cst_27 = arith.constant 1.000000e+00 : f32
    %46 = vector.broadcast %cst_27 : f32 to vector<8x1xf32>
    %47 = arith.addf %46, %45 : vector<8x1xf32>
    %48 = arith.divf %46, %47 : vector<8x1xf32>
    %c0_28 = arith.constant 0 : index
    %c0_29 = arith.constant 0 : index
    %49 = vector.load %arg10[%c0_28, %c0_29] : memref<8x1xf32, #tpu.memory_space<vmem>>, vector<8x1xf32>
    tpu.vector_store %arg10[%c0_28, %c0_29], %48 {strides = array<i32>} : memref<8x1xf32, #tpu.memory_space<vmem>>, vector<8x1xf32>,
    return
  }
}

</mosaic_0001>

<llo_original>
// kernel: tpu_custom_call.1
$region0: #{tpu_custom_call.1}
  #allocation0 [shape = 'u32[]', space=smem, size = 0x4, offset = 0x4, fixed_abs, tag = 'smem constant byte address 0x4 - core index']
  #allocation1 [shape = 'u32[144,128]{1,0:T(1,128)}', space=vmem, size = 0x12000, scoped, tag = 'internal scratch']
  #allocation2 [shape = 'f32[64,128]{1,0:T(8,128)}', space=vmem, size = 0x8000, scoped, tag = 'scratch operand']
  #allocation3 [shape = 's32[1]{0:T(128)S(6)}', space=smem, size = 0x200, scoped, tag = 'scoped memory for tpu_custom_call.1']
  #allocation4 [shape = 'f32[1,1]{1,0:T(1,128)S(1)}', space=vmem, size = 0x200, scoped, tag = 'scoped memory for tpu_custom_call.1']
  %s0 = inlined_call_operand.vmem [shape: bf16[64,32], index: 0, kind: input, shape index: {}]
  %s1 = inlined_call_operand.vmem [shape: s32[8,1], index: 1, kind: input, shape index: {}]
  %s2 = inlined_call_operand.<no memory space> [shape: s32[1], index: 2, kind: input, shape index: {}]
  %s3 = inlined_call_operand.vmem [shape: bf16[32,128], index: 3, kind: input, shape index: {}]
  %s4 = inlined_call_operand.vmem [shape: f32[1,128], index: 4, kind: input, shape index: {}]
  %s5 = inlined_call_operand.vmem [shape: bf16[32,128], index: 5, kind: input, shape index: {}]
  %s6 = inlined_call_operand.vmem [shape: f32[1,128], index: 6, kind: input, shape index: {}]
  %s7 = inlined_call_operand.vmem [shape: bf16[32,128], index: 7, kind: input, shape index: {}]
  %s8 = inlined_call_operand.vmem [shape: f32[1,32], index: 8, kind: input, shape index: {}]
  %s9 = inlined_call_operand.<no memory space> [shape: f32[1,1], index: 9, kind: input, shape index: {}]
  %s10 = inlined_call_operand.vmem [shape: f32[8,1], index: 10, kind: output, shape index: {}]
  %s11 = sld [smem:[#allocation0]]
  $region57: #{tpu_custom_call.1} parent=0
    _
  %s13 = ssub.s32 1, %s11
  %s14 = scalar_select 0, %s13, %s11
  %15 = sst [smem:[#allocation3]] %s2
  %v16 = vstv %s9
  %17 = vst [vmem:[#allocation4] sm:$0x1] %v16
  // Predicated region
  $region2: #{tpu_custom_call.1} parent=0 // pred_check
    _
  $region3: #{tpu_custom_call.1} parent=0 // pred_check_branch
    %19 = sbr.rel (0) target = $region5
  $region4: #{tpu_custom_call.1} parent=0 // pred_region
    _
  $region5: #{tpu_custom_call.1} parent=0 // pred_fallthru
    _
  // Predicated region
  $region6: #{tpu_custom_call.1} parent=0 // pred_check
    _
  $region7: #{tpu_custom_call.1} parent=0 // pred_check_branch
    %21 = sbr.rel (0) target = $region9
  $region8: #{tpu_custom_call.1} parent=0 // pred_region
    _
  $region9: #{tpu_custom_call.1} parent=0 // pred_fallthru
    _
  // Predicated region
  $region10: #{tpu_custom_call.1} parent=0 // pred_check
    _
  $region11: #{tpu_custom_call.1} parent=0 // pred_check_branch
    %23 = sbr.rel (0) target = $region13
  $region12: #{tpu_custom_call.1} parent=0 // pred_region
    _
  $region13: #{tpu_custom_call.1} parent=0 // pred_fallthru
    _
  // Predicated region
  $region14: #{tpu_custom_call.1} parent=0 // pred_check
    _
  $region15: #{tpu_custom_call.1} parent=0 // pred_check_branch
    %25 = sbr.rel (0) target = $region17
  $region16: #{tpu_custom_call.1} parent=0 // pred_region
    _
  $region17: #{tpu_custom_call.1} parent=0 // pred_fallthru
    _
  // Predicated region
  $region18: #{tpu_custom_call.1} parent=0 // pred_check
    _
  $region19: #{tpu_custom_call.1} parent=0 // pred_check_branch
    %27 = sbr.rel (0) target = $region21
  $region20: #{tpu_custom_call.1} parent=0 // pred_region
    _
  $region21: #{tpu_custom_call.1} parent=0 // pred_fallthru
    _
  // Predicated region
  $region22: #{tpu_custom_call.1} parent=0 // pred_check
    _
  $region23: #{tpu_custom_call.1} parent=0 // pred_check_branch
    %29 = sbr.rel (0) target = $region25
  $region24: #{tpu_custom_call.1} parent=0 // pred_region
    _
  $region25: #{tpu_custom_call.1} parent=0 // pred_fallthru
    _
  // Predicated region
  $region26: #{tpu_custom_call.1} parent=0 // pred_check
    _
  $region27: #{tpu_custom_call.1} parent=0 // pred_check_branch
    %31 = sbr.rel (0) target = $region29
  $region28: #{tpu_custom_call.1} parent=0 // pred_region
    _
  $region29: #{tpu_custom_call.1} parent=0 // pred_fallthru
    _
  // Predicated region
  $region30: #{tpu_custom_call.1} parent=0 // pred_check
    _
  $region31: #{tpu_custom_call.1} parent=0 // pred_check_branch
    %33 = sbr.rel (0) target = $region33
  $region32: #{tpu_custom_call.1} parent=0 // pred_region
    _
  $region33: #{tpu_custom_call.1} parent=0 // pred_fallthru
    _
  // Predicated region
  $region34: #{tpu_custom_call.1} parent=0 // pred_check
    _
  $region35: #{tpu_custom_call.1} parent=0 // pred_check_branch
    %35 = sbr.rel (0) target = $region37
  $region36: #{tpu_custom_call.1} parent=0 // pred_region
    _
  $region37: #{tpu_custom_call.1} parent=0 // pred_fallthru
    _
  // Predicated region
  $region38: #{tpu_custom_call.1} parent=0 // pred_check
    _
  $region39: #{tpu_custom_call.1} parent=0 // pred_check_branch
    %37 = sbr.rel (0) target = $region41
  $region40: #{tpu_custom_call.1} parent=0 // pred_region
    _
  $region41: #{tpu_custom_call.1} parent=0 // pred_fallthru
    _
  %v39 = vld [vmem:[%s0] sm:$0xf]
  %v40 = vld [vmem:[%s0 + $0x4] sm:$0xf]
  %v41 = vld [vmem:[%s0 + $0x8] sm:$0xf]
  %v42 = vld [vmem:[%s0 + $0xc] sm:$0xf]
  %v43 = vld [vmem:[%s0 + $0x10] sm:$0xf]
  %v44 = vld [vmem:[%s0 + $0x14] sm:$0xf]
  %v45 = vld [vmem:[%s0 + $0x18] sm:$0xf]
  %v46 = vld [vmem:[%s0 + $0x1c] sm:$0xf]
  %v47 = vld [vmem:[%s5] sm:$0xf]
  %v48 = vld [vmem:[%s5 + $0x4] sm:$0xf]
  %v49 = vld [vmem:[%s5 + $0x8] sm:$0xf]
  %v50 = vld [vmem:[%s5 + $0xc] sm:$0xf]
  %v51 = vld [vmem:[%s6] sm:$0x1]
  %v53 = vlaneseq
  %v54 = vshrl.u32 %v53, 7
  %v55 = vsub.s32 0, %v54
  %v56 = vrot.slane %v51, %v55
  %v66 = vunpack.c.l.b16 %v39
  %v67 = vunpack.c.l.b16 %v40
  %v68 = vunpack.c.l.b16 %v41
  %v69 = vunpack.c.l.b16 %v42
  %v70 = vunpack.c.l.b16 %v43
  %v71 = vunpack.c.l.b16 %v44
  %v72 = vunpack.c.l.b16 %v45
  %v73 = vunpack.c.l.b16 %v46
  %v74 = vpack.c.b16 %v67, %v66
  %v75 = vpack.c.b16 %v69, %v68
  %v76 = vpack.c.b16 %v71, %v70
  %v77 = vpack.c.b16 %v73, %v72
  %v82 = vunpack.c.l.b16 %v47
  %v83 = vunpack.c.l.b16 %v48
  %v84 = vunpack.c.l.b16 %v49
  %v85 = vunpack.c.l.b16 %v50
  %v86 = vpack.c.b16 %v83, %v82
  %v87 = vpack.c.b16 %v85, %v84
  %vm90 = vcmask 261120
  %v92 = vsel %vm90, %v74, 0
  %v95 = vsel %vm90, %v75, 0
  %v98 = vsel %vm90, %v76, 0
  %v101 = vsel %vm90, %v77, 0
  %103 = vmatprep.subr.bf16.mxu0 0
  %104 = vmatpush1.bf16.msra.mxu0 %v86
  %105 = vmatprep.subr.bf16.mxu0 0
  %106 = vmatpush1.bf16.msra.mxu0 %v87
  %107 = vmatprep.subr.bf16.mxu0 0
  %108 = vmatpush1.bf16.msra.mxu0 0
  %109 = vmatprep.subr.bf16.mxu0 0
  %110 = vmatpush1.bf16.msra.mxu0 0
  %111 = vmatprep.subr.bf16.mxu0 0
  %112 = vmatpush1.bf16.msra.mxu0 0
  %113 = vmatprep.subr.bf16.mxu0 0
  %114 = vmatpush1.bf16.msra.mxu0 0
  %115 = vmatprep.subr.bf16.mxu0 0
  %116 = vmatpush1.bf16.msra.mxu0 0
  %117 = vmatprep.subr.bf16.mxu0 0
  %118 = vmatpush1.bf16.msra.mxu0 0
  %119 = vmatprep.subr.bf16.mxu0 0
  %120 = vmatpush1.bf16.msra.mxu0 0
  %121 = vmatprep.subr.bf16.mxu0 0
  %122 = vmatpush1.bf16.msra.mxu0 0
  %123 = vmatprep.subr.bf16.mxu0 0
  %124 = vmatpush1.bf16.msra.mxu0 0
  %125 = vmatprep.subr.bf16.mxu0 0
  %126 = vmatpush1.bf16.msra.mxu0 0
  %127 = vmatprep.subr.bf16.mxu0 0
  %128 = vmatpush1.bf16.msra.mxu0 0
  %129 = vmatprep.subr.bf16.mxu0 0
  %130 = vmatpush1.bf16.msra.mxu0 0
  %131 = vmatprep.subr.bf16.mxu0 0
  %132 = vmatpush1.bf16.msra.mxu0 0
  %133 = vmatprep.subr.bf16.mxu0 0
  %134 = vmatpush1.bf16.msra.mxu0 0
  %135 = vmatprep.mubr.bf16.mxu0 0
  %136 = vmatmul.mubr.bf16.gmra.mrb[0].mxu0 %v92
  %v137 = vpop.f32.mrb[0].mxu0
  %v138 = vadd.f32 %v56, %v137
  %v139 = vpop.f32.mrb[0].mxu0
  %v140 = vpop.f32.mrb[0].mxu0
  %v141 = vadd.f32 %v56, %v140
  %v142 = vpop.f32.mrb[0].mxu0
  %143 = vmatprep.mubr.bf16.mxu0 0
  %144 = vmatmul.mubr.bf16.gmra.mrb[0].mxu0 %v95
  %v145 = vpop.f32.mrb[0].mxu0
  %v146 = vadd.f32 %v56, %v145
  %v147 = vpop.f32.mrb[0].mxu0
  %v148 = vpop.f32.mrb[0].mxu0
  %v149 = vadd.f32 %v56, %v148
  %v150 = vpop.f32.mrb[0].mxu0
  %151 = vmatprep.mubr.bf16.mxu0 0
  %152 = vmatmul.mubr.bf16.gmra.mrb[0].mxu0 %v98
  %v153 = vpop.f32.mrb[0].mxu0
  %v154 = vadd.f32 %v56, %v153
  %v155 = vpop.f32.mrb[0].mxu0
  %v156 = vpop.f32.mrb[0].mxu0
  %v157 = vadd.f32 %v56, %v156
  %v158 = vpop.f32.mrb[0].mxu0
  %159 = vmatprep.mubr.bf16.mxu0 0
  %160 = vmatmul.mubr.bf16.gmra.mrb[0].mxu0 %v101
  %v161 = vpop.f32.mrb[0].mxu0
  %v162 = vadd.f32 %v56, %v161
  %v163 = vpop.f32.mrb[0].mxu0
  %v164 = vpop.f32.mrb[0].mxu0
  %v165 = vadd.f32 %v56, %v164
  %v166 = vpop.f32.mrb[0].mxu0
  %167 = vdwg.mxu0
  %168 = vst [vmem:[#allocation2] sm:$0xff] %v138
  %169 = vst [vmem:[#allocation2 + $0x8] sm:$0xff] %v141
  %170 = vst [vmem:[#allocation2 + $0x10] sm:$0xff] %v146
  %171 = vst [vmem:[#allocation2 + $0x18] sm:$0xff] %v149
  %172 = vst [vmem:[#allocation2 + $0x20] sm:$0xff] %v154
  %173 = vst [vmem:[#allocation2 + $0x28] sm:$0xff] %v157
  %174 = vst [vmem:[#allocation2 + $0x30] sm:$0xff] %v162
  %175 = vst [vmem:[#allocation2 + $0x38] sm:$0xff] %v165
  %v176 = vld [vmem:[%s0] sm:$0xf]
  %v177 = vld [vmem:[%s3] sm:$0xf]
  %v178 = vld [vmem:[%s3 + $0x4] sm:$0xf]
  %v179 = vld [vmem:[%s3 + $0x8] sm:$0xf]
  %v180 = vld [vmem:[%s3 + $0xc] sm:$0xf]
  %v181 = vld [vmem:[%s4] sm:$0x1]
  %v183 = vlaneseq
  %v184 = vshrl.u32 %v183, 7
  %v185 = vsub.s32 0, %v184
  %v186 = vrot.slane %v181, %v185
  %v192 = vunpack.c.l.b16 %v177
  %v193 = vunpack.c.l.b16 %v178
  %v194 = vunpack.c.l.b16 %v179
  %v195 = vunpack.c.l.b16 %v180
  %v196 = vpack.c.b16 %v193, %v192
  %v197 = vpack.c.b16 %v195, %v194
  %v201 = vsel %vm90, %v176, 0
  %203 = vmatprep.subr.bf16.mxu0 0
  %204 = vmatpush1.bf16.msra.mxu0 %v196
  %205 = vmatprep.subr.bf16.mxu0 0
  %206 = vmatpush1.bf16.msra.mxu0 %v197
  %207 = vmatprep.subr.bf16.mxu0 0
  %208 = vmatpush1.bf16.msra.mxu0 0
  %209 = vmatprep.subr.bf16.mxu0 0
  %210 = vmatpush1.bf16.msra.mxu0 0
  %211 = vmatprep.subr.bf16.mxu0 0
  %212 = vmatpush1.bf16.msra.mxu0 0
  %213 = vmatprep.subr.bf16.mxu0 0
  %214 = vmatpush1.bf16.msra.mxu0 0
  %215 = vmatprep.subr.bf16.mxu0 0
  %216 = vmatpush1.bf16.msra.mxu0 0
  %217 = vmatprep.subr.bf16.mxu0 0
  %218 = vmatpush1.bf16.msra.mxu0 0
  %219 = vmatprep.subr.bf16.mxu0 0
  %220 = vmatpush1.bf16.msra.mxu0 0
  %221 = vmatprep.subr.bf16.mxu0 0
  %222 = vmatpush1.bf16.msra.mxu0 0
  %223 = vmatprep.subr.bf16.mxu0 0
  %224 = vmatpush1.bf16.msra.mxu0 0
  %225 = vmatprep.subr.bf16.mxu0 0
  %226 = vmatpush1.bf16.msra.mxu0 0
  %227 = vmatprep.subr.bf16.mxu0 0
  %228 = vmatpush1.bf16.msra.mxu0 0
  %229 = vmatprep.subr.bf16.mxu0 0
  %230 = vmatpush1.bf16.msra.mxu0 0
  %231 = vmatprep.subr.bf16.mxu0 0
  %232 = vmatpush1.bf16.msra.mxu0 0
  %233 = vmatprep.subr.bf16.mxu0 0
  %234 = vmatpush1.bf16.msra.mxu0 0
  %235 = vmatprep.mubr.bf16.mxu0 0
  %236 = vmatmul.mubr.bf16.gmra.mrb[0].mxu0 %v201
  %v237 = vpop.f32.mrb[0].mxu0
  %v238 = vadd.f32 %v186, %v237
  %v239 = vpop.f32.mrb[0].mxu0
  %v240 = vpop.f32.mrb[0].mxu0
  %v241 = vpop.f32.mrb[0].mxu0
  %242 = vdwg.mxu0
  %v243 = vxor.u32 %v238, 2147483648
  %v244 = vmul.f32 %v243, 1.442695
  %v245 = vpow.pop %v244
  %v246 = vadd.f32 %v245, 1.0
  %v247 = vrcp.pop %v246
  %v248 = vmul.f32 1.0, %v247
  %v249 = vmul.f32 %v248, 2.0
  %v250 = vsub.f32 %v249, 1.0
  %252 = vrot.lane.b32.xlu0 %v250, 64
  %v253 = vpop.permute.xlu0 %252
  %v255 = vmul.f32 %v248, %v253
  %v256 = vtanh.pop %v255
  %258 = vrot.lane.b32.xlu0 %v256, 96
  %v259 = vpop.permute.xlu0 %258
  %v261 = vmul.f32 %v248, %v259
  %v262 = vld [vmem:[%s1] sm:$0xff]
  %s263 = sld [smem:[#allocation3]]
  %s264 = ssub.s32 8, %s263
  // While loop
  $region42: #{tpu_custom_call.1} parent=0 // loop_pre_header
    _
  $region43: #{tpu_custom_call.1} parent=0 // loop_header
    %s266 = sphi %s264, %s268
    %p267 = scmp.ge.s32.totalorder %s266, 8
    %v271 = vphi 0.0, %v373
    %v272 = vphi 0.0, %v374
  $region44: #{tpu_custom_call.1} parent=0 // loop_header_branch
    %270 = sbr.rel (%p267) target = $region48
  $region45: #{tpu_custom_call.1} parent=0 // loop_body
    %s273 = ssub.s32 7, %s266
    %s274 = smul.u32 %s273, 8
    %s275 = scalar_lea.vmem [#allocation2], %s274
    %v276 = vld [vmem:[%s275] sm:$0xff]
    %v277 = vpack.c.bf16 %v271, %v271
    %v278 = vld [vmem:[%s7] sm:$0xf]
    %v279 = vld [vmem:[%s7 + $0x4] sm:$0xf]
    %v280 = vld [vmem:[%s7 + $0x8] sm:$0xf]
    %v281 = vld [vmem:[%s7 + $0xc] sm:$0xf]
    %283 = vrot.lane.b32.xlu0 %v277, 32
    %v284 = vpop.permute.xlu0 %283
    %v289 = vunpack.c.l.b16 %v278
    %v290 = vunpack.c.l.b16 %v279
    %v291 = vunpack.c.l.b16 %v280
    %v292 = vunpack.c.l.b16 %v281
    %v293 = vpack.c.b16 %v290, %v289
    %v294 = vpack.c.b16 %v292, %v291
    %v298 = vsel %vm90, %v284, 0
    %300 = vmatprep.subr.bf16.mxu0 0
    %301 = vmatpush1.bf16.msra.mxu0 %v293
    %302 = vmatprep.subr.bf16.mxu0 0
    %303 = vmatpush1.bf16.msra.mxu0 %v294
    %304 = vmatprep.subr.bf16.mxu0 0
    %305 = vmatpush1.bf16.msra.mxu0 0
    %306 = vmatprep.subr.bf16.mxu0 0
    %307 = vmatpush1.bf16.msra.mxu0 0
    %308 = vmatprep.subr.bf16.mxu0 0
    %309 = vmatpush1.bf16.msra.mxu0 0
    %310 = vmatprep.subr.bf16.mxu0 0
    %311 = vmatpush1.bf16.msra.mxu0 0
    %312 = vmatprep.subr.bf16.mxu0 0
    %313 = vmatpush1.bf16.msra.mxu0 0
    %314 = vmatprep.subr.bf16.mxu0 0
    %315 = vmatpush1.bf16.msra.mxu0 0
    %316 = vmatprep.subr.bf16.mxu0 0
    %317 = vmatpush1.bf16.msra.mxu0 0
    %318 = vmatprep.subr.bf16.mxu0 0
    %319 = vmatpush1.bf16.msra.mxu0 0
    %320 = vmatprep.subr.bf16.mxu0 0
    %321 = vmatpush1.bf16.msra.mxu0 0
    %322 = vmatprep.subr.bf16.mxu0 0
    %323 = vmatpush1.bf16.msra.mxu0 0
    %324 = vmatprep.subr.bf16.mxu0 0
    %325 = vmatpush1.bf16.msra.mxu0 0
    %326 = vmatprep.subr.bf16.mxu0 0
    %327 = vmatpush1.bf16.msra.mxu0 0
    %328 = vmatprep.subr.bf16.mxu0 0
    %329 = vmatpush1.bf16.msra.mxu0 0
    %330 = vmatprep.subr.bf16.mxu0 0
    %331 = vmatpush1.bf16.msra.mxu0 0
    %332 = vmatprep.mubr.bf16.mxu0 0
    %333 = vmatmul.mubr.bf16.gmra.mrb[0].mxu0 %v298
    %v334 = vpop.f32.mrb[0].mxu0
    %v335 = vadd.f32 0.0, %v334
    %v336 = vpop.f32.mrb[0].mxu0
    %v337 = vpop.f32.mrb[0].mxu0
    %v338 = vpop.f32.mrb[0].mxu0
    %339 = vdwg.mxu0
    %v340 = vadd.f32 %v276, %v335
    %v341 = vxor.u32 %v340, 2147483648
    %v342 = vmul.f32 %v341, 1.442695
    %v343 = vpow.pop %v342
    %v344 = vadd.f32 %v343, 1.0
    %v345 = vrcp.pop %v344
    %v346 = vmul.f32 1.0, %v345
    %v347 = vmul.f32 %v346, 2.0
    %v348 = vsub.f32 %v347, 1.0
    %v349 = vmul.f32 %v346, %v272
    %351 = vrot.lane.b32.xlu0 %v348, 64
    %v352 = vpop.permute.xlu0 %351
    %v354 = vmul.f32 %v346, %v352
    %356 = vrot.lane.b32.xlu0 %v354, 32
    %v357 = vpop.permute.xlu0 %356
    %v359 = vadd.f32 %v349, %v357
    %v360 = vtanh.pop %v359
    %362 = vrot.lane.b32.xlu0 %v360, 64
    %v363 = vpop.permute.xlu0 %362
    %v365 = vmul.f32 %v346, %v363
    %v366 = vstv %s273
    %vm367 = vcmp.lt.s32.totalorder %v366, %v262
    %v368 = vsel %vm367, 1, 0
    %369 = vset.pattern.permute.xlu0 0
    %370 = vperm.xlu0 %369, %v368
    %v371 = vpop.permute.xlu0 %370
    %vm372 = vcmp.eq.s32.totalorder %v371, 1
    %v373 = vsel %vm372, %v365, %v271
    %v374 = vsel %vm372, %v359, %v272
  $region46: #{tpu_custom_call.1} parent=0 // loop_footer
    %s268 = sadd.s32 %s266, 1
  $region47: #{tpu_custom_call.1} parent=0 // loop_footer_branch
    %265 = sbr.rel target = $region43
  $region48: #{tpu_custom_call.1} parent=0 // loop_exit
    _
  %v375 = vadd.f32 %v261, %v271
  %v376 = vld [vmem:[%s8] sm:$0x1]
  %v378 = vlaneseq
  %v379 = vshrl.u32 %v378, 7
  %v380 = vsub.s32 0, %v379
  %v381 = vrot.slane %v376, %v380
  %382 = vrot.lane.b32.xlu0 %v381, 96
  %v383 = vpop.permute.xlu0 %382
  %v385 = vmul.f32 %v375, %v383
  %387 = vrot.lane.b32.xlu0 %v385, 32
  %v388 = vpop.permute.xlu0 %387
  %v390 = vsel %vm90, %v388, 0.0
  %391 = vadd.xlane.f32.xlu0 %v390
  %v392 = vpop.xlane.xlu0 %391
  %v393 = vld [vmem:[#allocation4] sm:$0x1]
  %v395 = vlaneseq
  %v396 = vshrl.u32 %v395, 7
  %v397 = vsub.s32 0, %v396
  %v398 = vrot.slane %v393, %v397
  %v400 = vadd.f32 %v392, %v398
  %v401 = vxor.u32 %v400, 2147483648
  %v402 = vmul.f32 %v401, 1.442695
  %v403 = vpow.pop %v402
  %v404 = vadd.f32 %v403, 1.0
  %v405 = vrcp.pop %v404
  %v406 = vmul.f32 1.0, %v405
  %vm407 = vcmask 7168
  %408 = vst.msk [vmem:[%s10] sm:$0xff] %vm407, %v406
  // Predicated region
  $region49: #{tpu_custom_call.1} parent=0 // pred_check
    _
  $region50: #{tpu_custom_call.1} parent=0 // pred_check_branch
    %410 = sbr.rel (0) target = $region52
  $region51: #{tpu_custom_call.1} parent=0 // pred_region
    _
  $region52: #{tpu_custom_call.1} parent=0 // pred_fallthru
    _
  // Predicated region
  $region53: #{tpu_custom_call.1} parent=0 // pred_check
    _
  $region54: #{tpu_custom_call.1} parent=0 // pred_check_branch
    %412 = sbr.rel (0) target = $region56
  $region55: #{tpu_custom_call.1} parent=0 // pred_region
    _
  $region56: #{tpu_custom_call.1} parent=0 // pred_fallthru
    _

</llo_original>
